<compile_context>
chip_gen: v7x
topology: tpu7x:2x2x1
jax: 0.10.0
libtpu: 0.0.40
codegen_flags: <defaults>
</compile_context>

<pallas_src>
import functools

import jax
import jax.numpy as jnp
from jax.experimental import pallas as pl
from jax.experimental.pallas import tpu as pltpu

EPS = 1e-12          # matches the PyTorch module (below f32 ulp for x ~ O(1))
LANES = 128
SUBLANES = 8
MAX_TILE_ROWS = 1024  # (1024,128) f32 = 512 KiB per operand per pipeline buffer


def _wbce_kernel(x_ref, t_ref, w_ref, o_ref, *, valid_rows, tile_rows, sum_rows,
                 blocks_per_split, any_masked, binary_labels):
    c = pl.program_id(0)   # row-range split ("parallel": both v7x TensorCores)
    s = pl.program_id(1)   # reduction over row blocks within the split

    @pl.when(s == 0)
    def _init():
        o_ref[...] = jnp.zeros_like(o_ref)

    x = x_ref[...].astype(jnp.float32)
    t = t_ref[...].astype(jnp.float32)
    w = w_ref[...].astype(jnp.float32)

    def partial_sum(xv, tv, wv):
        # w * ( t*log(x+eps) + (1-t)*log(1-x+eps) )  (EUP logs + VPU mul/add)
        if binary_labels:
            contrib = wv * jnp.log(jnp.where(tv > 0.5, xv, 1.0 - xv) + EPS)
        else:
            contrib = wv * (tv * jnp.log(xv + EPS)
                            + (1.0 - tv) * jnp.log(1.0 - xv + EPS))
        if tile_rows == sum_rows:
            return contrib
        # Sublane-major add tree: (tile_rows,128) -> (8,128).  Layout-preserving
        # reshape (trailing (8,128) matches the native tile); pure VPU adds.
        return jnp.sum(contrib.reshape(tile_rows // sum_rows, sum_rows, LANES),
                       axis=0)

    if not any_masked:
        o_ref[...] += partial_sum(x, t, w)
    else:
        block_start = (c * blocks_per_split + s) * tile_rows
        is_full = block_start + tile_rows <= valid_rows

        @pl.when(is_full)
        def _full_block():          # full blocks: zero masking overhead
            o_ref[...] += partial_sum(x, t, w)

        @pl.when(jnp.logical_not(is_full))
        def _ragged_block():        # ragged / fully-out-of-range blocks
            rid = block_start + jax.lax.broadcasted_iota(
                jnp.int32, (tile_rows, 1), 0)
            valid = rid < valid_rows
            # Sanitize *before* the logs: out-of-bounds rows can hold arbitrary
            # bits, so force them to finite values and zero weight.
            xs = jnp.where(valid, x, 0.5)
            ts = jnp.where(valid, t, 0.0)
            ws = jnp.where(valid, w, 0.0)
            o_ref[...] += partial_sum(xs, ts, ws)


def weighted_bce_loss(inputs, targets, *, max_tile_rows=MAX_TILE_ROWS,
                      n_splits=None, binary_labels=False):
    """inputs: [B, N] probabilities in (0,1); targets: [B, N, 2] = (label, weight)."""
    numel = inputs.size
    x = inputs.reshape(-1)
    t = targets[..., 0].reshape(-1)
    w = targets[..., 1].reshape(-1)

    # Only pad to the 128-lane boundary (skipped when already aligned).  Padded
    # weights are 0 -> zero contribution; padded x = 0.5 keeps the logs finite.
    rem = numel % LANES
    if rem:
        pad = LANES - rem
        x = jnp.pad(x, (0, pad), constant_values=0.5)
        t = jnp.pad(t, (0, pad))
        w = jnp.pad(w, (0, pad))

    rows = x.shape[0] // LANES
    x2 = x.reshape(rows, LANES)
    t2 = t.reshape(rows, LANES)
    w2 = w.reshape(rows, LANES)

    max_tile_rows = max(SUBLANES, (max_tile_rows // SUBLANES) * SUBLANES)
    if rows >= SUBLANES:
        tile_rows = min(max_tile_rows, (rows // SUBLANES) * SUBLANES)
        sum_rows = SUBLANES
    else:                                  # tiny inputs: single full-array block
        tile_rows = rows
        sum_rows = rows

    total_blocks = pl.cdiv(rows, tile_rows)
    if n_splits is None:
        n_splits = 2 if total_blocks >= 2 else 1
    n_splits = max(1, min(n_splits, total_blocks))
    blocks_per_split = pl.cdiv(total_blocks, n_splits)
    padded_blocks = n_splits * blocks_per_split
    any_masked = padded_blocks * tile_rows != rows

    if padded_blocks == total_blocks:
        def row_block(c, s):
            return (c * blocks_per_split + s, 0)
    else:
        # Splits that run past the last block re-read (and fully mask) it, so
        # the pipeline DMA never goes out of bounds.
        def row_block(c, s):
            return (jnp.minimum(c * blocks_per_split + s, total_blocks - 1), 0)

    data_spec = pl.BlockSpec((tile_rows, LANES), row_block)

    kernel = functools.partial(
        _wbce_kernel, valid_rows=rows, tile_rows=tile_rows, sum_rows=sum_rows,
        blocks_per_split=blocks_per_split, any_masked=any_masked,
        binary_labels=binary_labels)

    bytes_per_elem = x2.dtype.itemsize + t2.dtype.itemsize + w2.dtype.itemsize
    cost = pl.CostEstimate(
        flops=6 * numel,
        transcendentals=(1 if binary_labels else 2) * numel,
        bytes_accessed=bytes_per_elem * numel + n_splits * sum_rows * LANES * 4,
    )

    partials = pl.pallas_call(
        kernel,
        out_shape=jax.ShapeDtypeStruct((n_splits * sum_rows, LANES), jnp.float32),
        grid_spec=pltpu.PrefetchScalarGridSpec(
            num_scalar_prefetch=0,
            grid=(n_splits, blocks_per_split),
            in_specs=[data_spec, data_spec, data_spec],
            out_specs=pl.BlockSpec((sum_rows, LANES), lambda c, s: (c, 0)),
        ),
        compiler_params=pltpu.CompilerParams(
            dimension_semantics=("parallel", "arbitrary"),
            # Review #1: let XLA fuse the targets[...,0]/[...,1] slices and the
            # input reshape into the kernel's input fetch (no HBM materialize).
            allow_input_fusion=[True, True, True],
            vmem_limit_bytes=32 * 1024 * 1024,
        ),
        cost_estimate=cost,
    )(x2, t2, w2)

    # Tiny (n_splits*8, 128) lane-dense partial-sum slab; final reduce + scale
    # handled by XLA outside the kernel.
    return -jnp.sum(partials) / jnp.float32(numel)


def weighted_bce_loss_ref(inputs, targets):
    """Literal JAX transcription of the PyTorch forward pass."""
    t = targets[:, :, 0].reshape(-1).astype(jnp.float32)
    w = targets[:, :, 1].reshape(-1).astype(jnp.float32)
    x = inputs.reshape(-1).astype(jnp.float32)
    buf1 = jnp.log(x + EPS) * w
    out = -jnp.dot(t, buf1)
    buf2 = jnp.log(1.0 - x + EPS) * w
    return (out - jnp.sum(buf2) + jnp.dot(t, buf2)) / x.shape[0]


if __name__ == "__main__":
    def make_case(key, B, N):
        k1, k2, k3 = jax.random.split(key, 3)
        x = jax.random.uniform(k1, (B, N), jnp.float32, minval=0.01, maxval=0.99)
        labels = (jax.random.uniform(k2, (B, N)) > 0.5).astype(jnp.float32)
        weights = jax.random.uniform(k3, (B, N), jnp.float32, minval=0.0, maxval=2.0)
        return x, jnp.stack([labels, weights], axis=-1)   # [B, N, 2]

    k1, k2, k3 = jax.random.split(jax.random.PRNGKey(0), 3)

    # Case 1: single grid step (init/accumulate/finalize in one invocation).
    x, tg = make_case(k1, 2, 1024)
    out = jax.block_until_ready(weighted_bce_loss(x, tg))
    ref = weighted_bce_loss_ref(x, tg)
    assert jnp.allclose(out, ref, rtol=1e-5, atol=1e-6), (out, ref)

    # Binary-label fast path (labels here are exactly 0/1 -> identical result).
    out_b = jax.block_until_ready(weighted_bce_loss(x, tg, binary_labels=True))
    assert jnp.allclose(out_b, ref, rtol=1e-5, atol=1e-6), (out_b, ref)

    # Case 2: lane padding + 2-way split with a clamped fully-out-of-range block.
    x, tg = make_case(k2, 3, 1000)
    out = jax.block_until_ready(weighted_bce_loss(x, tg, max_tile_rows=8))
    ref = weighted_bce_loss_ref(x, tg)
    assert jnp.allclose(out, ref, rtol=1e-5, atol=1e-6), (out, ref)

    # Case 3: ragged trailing row block (9 rows, 8-row tiles, 2-way split).
    x, tg = make_case(k3, 2, 576)
    out = jax.block_until_ready(weighted_bce_loss(x, tg, max_tile_rows=8))
    ref = weighted_bce_loss_ref(x, tg)
    assert jnp.allclose(out, ref, rtol=1e-5, atol=1e-6), (out, ref)

    print("KERNEL_OK")
</pallas_src>

<mosaic_0001>
module attributes {stable_mosaic.version = 11 : i64} {
  func.func @_wbce_kernel(%arg0: i32, %arg1: i32, %arg2: memref<16x128xf32, #tpu.memory_space<vmem>>, %arg3: memref<16x128xf32, #tpu.memory_space<vmem>>, %arg4: memref<16x128xf32, #tpu.memory_space<vmem>>, %arg5: memref<8x128xf32, #tpu.memory_space<vmem>>) attributes {dimension_semantics = [#tpu.dimension_semantics<parallel>, #tpu.dimension_semantics<arbitrary>], iteration_bounds = array<i64: 1, 1>, scalar_prefetch = 0 : i64, scratch_operands = 0 : i64, tpu.core_type = #tpu.core_type<tc>, window_params = [{transform_indices = @transform_0, window_bounds = array<i64: 16, 128>}, {transform_indices = @transform_1, window_bounds = array<i64: 16, 128>}, {transform_indices = @transform_2, window_bounds = array<i64: 16, 128>}, {transform_indices = @transform_3, window_bounds = array<i64: 8, 128>}]} {
    %c0_i32 = arith.constant 0 : i32
    %0 = arith.cmpi eq, %arg1, %c0_i32 : i32
    %1 = arith.extui %0 : i1 to i32
    %c0_i32_0 = arith.constant 0 : i32
    %2 = arith.cmpi ne, %1, %c0_i32_0 : i32
    scf.if %2 {
      %cst_14 = arith.constant 0.000000e+00 : f32
      %25 = vector.broadcast %cst_14 : f32 to vector<8x128xf32>
      %c0_15 = arith.constant 0 : index
      %c0_16 = arith.constant 0 : index
      %26 = vector.load %arg5[%c0_15, %c0_16] : memref<8x128xf32, #tpu.memory_space<vmem>>, vector<8x128xf32>
      tpu.vector_store %arg5[%c0_15, %c0_16], %25 {strides = array<i32>} : memref<8x128xf32, #tpu.memory_space<vmem>>, vector<8x128xf32>,
    } else {
    }
    %c0 = arith.constant 0 : index
    %c0_1 = arith.constant 0 : index
    %3 = vector.load %arg2[%c0, %c0_1] : memref<16x128xf32, #tpu.memory_space<vmem>>, vector<16x128xf32>
    %c0_2 = arith.constant 0 : index
    %c0_3 = arith.constant 0 : index
    %4 = vector.load %arg3[%c0_2, %c0_3] : memref<16x128xf32, #tpu.memory_space<vmem>>, vector<16x128xf32>
    %c0_4 = arith.constant 0 : index
    %c0_5 = arith.constant 0 : index
    %5 = vector.load %arg4[%c0_4, %c0_5] : memref<16x128xf32, #tpu.memory_space<vmem>>, vector<16x128xf32>
    %c0_6 = arith.constant 0 : index
    %c0_7 = arith.constant 0 : index
    %6 = vector.load %arg5[%c0_6, %c0_7] : memref<8x128xf32, #tpu.memory_space<vmem>>, vector<8x128xf32>
    %cst = arith.constant 9.99999996E-13 : f32
    %7 = vector.broadcast %cst : f32 to vector<16x128xf32>
    %8 = arith.addf %3, %7 : vector<16x128xf32>
    %9 = math.log %8 : vector<16x128xf32>
    %10 = arith.mulf %4, %9 : vector<16x128xf32>
    %cst_8 = arith.constant 1.000000e+00 : f32
    %11 = vector.broadcast %cst_8 : f32 to vector<16x128xf32>
    %12 = arith.subf %11, %4 : vector<16x128xf32>
    %cst_9 = arith.constant 1.000000e+00 : f32
    %13 = vector.broadcast %cst_9 : f32 to vector<16x128xf32>
    %14 = arith.subf %13, %3 : vector<16x128xf32>
    %cst_10 = arith.constant 9.99999996E-13 : f32
    %15 = vector.broadcast %cst_10 : f32 to vector<16x128xf32>
    %16 = arith.addf %14, %15 : vector<16x128xf32>
    %17 = math.log %16 : vector<16x128xf32>
    %18 = arith.mulf %12, %17 : vector<16x128xf32>
    %19 = arith.addf %10, %18 : vector<16x128xf32>
    %20 = arith.mulf %5, %19 : vector<16x128xf32>
    %21 = vector.shape_cast %20 : vector<16x128xf32> to vector<2x8x128xf32>
    %cst_11 = arith.constant dense<0.000000e+00> : vector<8x128xf32>
    %22 = vector.multi_reduction <add>, %21, %cst_11 [0] : vector<2x8x128xf32> to vector<8x128xf32>
    %23 = arith.addf %6, %22 : vector<8x128xf32>
    %c0_12 = arith.constant 0 : index
    %c0_13 = arith.constant 0 : index
    %24 = vector.load %arg5[%c0_12, %c0_13] : memref<8x128xf32, #tpu.memory_space<vmem>>, vector<8x128xf32>
    tpu.vector_store %arg5[%c0_12, %c0_13], %23 {strides = array<i32>} : memref<8x128xf32, #tpu.memory_space<vmem>>, vector<8x128xf32>,
    return
  }
  func.func @transform_0(%arg0: i32, %arg1: i32) -> (i32, i32) {
    %c1_i32 = arith.constant 1 : i32
    %0 = arith.muli %arg0, %c1_i32 : i32
    %1 = arith.addi %0, %arg1 : i32
    %c0_i32 = arith.constant 0 : i32
    %c0_i32_0 = arith.constant 0 : i32
    return %1, %c0_i32 : i32, i32
  }
  func.func @transform_1(%arg0: i32, %arg1: i32) -> (i32, i32) {
    %c1_i32 = arith.constant 1 : i32
    %0 = arith.muli %arg0, %c1_i32 : i32
    %1 = arith.addi %0, %arg1 : i32
    %c0_i32 = arith.constant 0 : i32
    %c0_i32_0 = arith.constant 0 : i32
    return %1, %c0_i32 : i32, i32
  }
  func.func @transform_2(%arg0: i32, %arg1: i32) -> (i32, i32) {
    %c1_i32 = arith.constant 1 : i32
    %0 = arith.muli %arg0, %c1_i32 : i32
    %1 = arith.addi %0, %arg1 : i32
    %c0_i32 = arith.constant 0 : i32
    %c0_i32_0 = arith.constant 0 : i32
    return %1, %c0_i32 : i32, i32
  }
  func.func @transform_3(%arg0: i32, %arg1: i32) -> (i32, i32) {
    %c0_i32 = arith.constant 0 : i32
    %c0_i32_0 = arith.constant 0 : i32
    return %arg0, %c0_i32 : i32, i32
  }
}

</mosaic_0001>

<llo_original>
// kernel: tpu_custom_call.1
$region0: #{tpu_custom_call.1}
  #allocation0 [shape = 'u32[]', space=smem, size = 0x4, offset = 0x4, fixed_abs, tag = 'smem constant byte address 0x4 - core index']
  #allocation1 [shape = 'u32[144,128]{1,0:T(1,128)}', space=vmem, size = 0x12000, scoped, tag = 'internal scratch']
  %s0 = inlined_call_operand.hbm [shape: f32[16,128], index: 0, kind: input, shape index: {}]
  %s1 = inlined_call_operand.hbm [shape: f32[16,128], index: 1, kind: input, shape index: {}]
  %s2 = inlined_call_operand.hbm [shape: f32[16,128], index: 2, kind: input, shape index: {}]
  %s3 = inlined_call_operand.hbm [shape: f32[8,128], index: 3, kind: output, shape index: {}]
  %s4 = sld [smem:[#allocation0]]
  $region38: #{tpu_custom_call.1} parent=0
    _
  %s6 = ssub.s32 1, %s4
  %s7 = scalar_select 0, %s6, %s4
  $region1: #{tpu_custom_call.1} parent=0
    #allocation2 [shape = 'u8[8192]{0}', space=vmem, size = 0x2000, scoped, tag = 'input window, operand 0, single buffered']
    #allocation3 [shape = 's32[1]{0}', space=sflag, size = 0x4, scoped, tag = 'scoped memory for tpu_custom_call.1']
    #allocation4 [shape = 's32[1]{0}', space=sflag, size = 0x4, scoped, tag = 'scoped memory for tpu_custom_call.1']
    #allocation5 [shape = 'u8[8192]{0}', space=vmem, size = 0x2000, scoped, tag = 'input window, operand 1, single buffered']
    #allocation6 [shape = 's32[1]{0}', space=sflag, size = 0x4, scoped, tag = 'scoped memory for tpu_custom_call.1']
    #allocation7 [shape = 'u8[8192]{0}', space=vmem, size = 0x2000, scoped, tag = 'input window, operand 2, single buffered']
    #allocation8 [shape = 'u8[4096]{0}', space=vmem, size = 0x1000, scoped, tag = 'output window, operand 0, single buffered']
    %8 = vsyncpa [#allocation3], 0
    %9 = vsyncpa [#allocation6], 0
    %10 = vsyncpa [#allocation4], 0
    // Predicated region
    $region2: #{tpu_custom_call.1} parent=1 // pred_check
      _
    $region3: #{tpu_custom_call.1} parent=1 // pred_check_branch
      %12 = sbr.rel (0) target = $region5
    $region4: #{tpu_custom_call.1} parent=1 // pred_region
      %s13 = sadd.s32 0, 0
      %s14 = smul.u32 2, %s13
      %s16 = ssub.s32 256, 256
      %17 = vsyncadd [#allocation3], %s16
      %s18 = smul.addr %s14, 128
      %s19 = scalar_lea.hbm %s0, %s18
      %s20 = sshll.u32 [#allocation2], 4
      %s21 = int_to_ptr.vmem [resolvable:$true] %s20
      %26 = dma.hbm_to_vmem [thread:$0]  %s19, 256, %s21, [#allocation3], 128, 128, 8
    $region5: #{tpu_custom_call.1} parent=1 // pred_fallthru
      _
    // Predicated region
    $region6: #{tpu_custom_call.1} parent=1 // pred_check
      _
    $region7: #{tpu_custom_call.1} parent=1 // pred_check_branch
      %28 = sbr.rel (0) target = $region9
    $region8: #{tpu_custom_call.1} parent=1 // pred_region
      %s29 = sadd.s32 0, 0
      %s30 = smul.u32 2, %s29
      %s32 = ssub.s32 256, 256
      %33 = vsyncadd [#allocation6], %s32
      %s34 = smul.addr %s30, 128
      %s35 = scalar_lea.hbm %s1, %s34
      %s36 = sshll.u32 [#allocation5], 4
      %s37 = int_to_ptr.vmem [resolvable:$true] %s36
      %42 = dma.hbm_to_vmem [thread:$0]  %s35, 256, %s37, [#allocation6], 128, 128, 8
    $region9: #{tpu_custom_call.1} parent=1 // pred_fallthru
      _
    // Predicated region
    $region10: #{tpu_custom_call.1} parent=1 // pred_check
      _
    $region11: #{tpu_custom_call.1} parent=1 // pred_check_branch
      %44 = sbr.rel (0) target = $region13
    $region12: #{tpu_custom_call.1} parent=1 // pred_region
      %s45 = sadd.s32 0, 0
      %s46 = smul.u32 2, %s45
      %s48 = ssub.s32 256, 256
      %49 = vsyncadd [#allocation6], %s48
      %s50 = smul.addr %s46, 128
      %s51 = scalar_lea.hbm %s2, %s50
      %s52 = sshll.u32 [#allocation7], 4
      %s53 = int_to_ptr.vmem [resolvable:$true] %s52
      %58 = dma.hbm_to_vmem [thread:$0]  %s51, 256, %s53, [#allocation6], 128, 128, 8
    $region13: #{tpu_custom_call.1} parent=1 // pred_fallthru
      _
    // Predicated region
    $region14: #{tpu_custom_call.1} parent=1 // pred_check
      _
    $region15: #{tpu_custom_call.1} parent=1 // pred_check_branch
      %60 = sbr.rel (0) target = $region17
    $region16: #{tpu_custom_call.1} parent=1 // pred_region
      %61 = dma.done [#allocation3], 256
    $region17: #{tpu_custom_call.1} parent=1 // pred_fallthru
      _
    // Predicated region
    $region18: #{tpu_custom_call.1} parent=1 // pred_check
      _
    $region19: #{tpu_custom_call.1} parent=1 // pred_check_branch
      %63 = sbr.rel (0) target = $region21
    $region20: #{tpu_custom_call.1} parent=1 // pred_region
      %64 = dma.done [#allocation6], 256
    $region21: #{tpu_custom_call.1} parent=1 // pred_fallthru
      _
    // Predicated region
    $region22: #{tpu_custom_call.1} parent=1 // pred_check
      _
    $region23: #{tpu_custom_call.1} parent=1 // pred_check_branch
      %66 = sbr.rel (0) target = $region25
    $region24: #{tpu_custom_call.1} parent=1 // pred_region
      %67 = dma.done [#allocation6], 256
    $region25: #{tpu_custom_call.1} parent=1 // pred_fallthru
      _
    %s68 = sadd.s32 0, 0
    %s69 = smul.u32 2, %s68
    %s70 = sadd.s32 0, 0
    %s71 = smul.u32 2, %s70
    %s72 = sadd.s32 0, 0
    %s73 = smul.u32 2, %s72
    %p74 = scmp.eq.s32.totalorder 0, 0
    // Predicated region
    $region26: #{tpu_custom_call.1} parent=1 // pred_check
      %p75 = pneg %p74
    $region27: #{tpu_custom_call.1} parent=1 // pred_check_branch
      %77 = sbr.rel (%p75) target = $region29
    $region28: #{tpu_custom_call.1} parent=1 // pred_region
      %78 = vst [vmem:[#allocation8] sm:$0xff] 0.0
    $region29: #{tpu_custom_call.1} parent=1 // pred_fallthru
      _
    %v79 = vld [vmem:[#allocation2] sm:$0xff]
    %v80 = vld [vmem:[#allocation2 + $0x8] sm:$0xff]
    %v81 = vld [vmem:[#allocation5] sm:$0xff]
    %v82 = vld [vmem:[#allocation5 + $0x8] sm:$0xff]
    %v83 = vld [vmem:[#allocation7] sm:$0xff]
    %v84 = vld [vmem:[#allocation7 + $0x8] sm:$0xff]
    %v85 = vld [vmem:[#allocation8] sm:$0xff]
    %v86 = vadd.f32 %v79, 1e-12
    %v87 = vadd.f32 %v80, 1e-12
    %v88 = vlog2.pop %v86
    %v89 = vmul.f32 %v88, 0.6931472
    %v90 = vlog2.pop %v87
    %v91 = vmul.f32 %v90, 0.6931472
    %v92 = vmul.f32 %v81, %v89
    %v93 = vmul.f32 %v82, %v91
    %v94 = vsub.f32 1.0, %v81
    %v95 = vsub.f32 1.0, %v82
    %v96 = vsub.f32 1.0, %v79
    %v97 = vsub.f32 1.0, %v80
    %v98 = vadd.f32 %v96, 1e-12
    %v99 = vadd.f32 %v97, 1e-12
    %v100 = vlog2.pop %v98
    %v101 = vmul.f32 %v100, 0.6931472
    %v102 = vlog2.pop %v99
    %v103 = vmul.f32 %v102, 0.6931472
    %v104 = vmul.f32 %v94, %v101
    %v105 = vmul.f32 %v95, %v103
    %v106 = vadd.f32 %v92, %v104
    %v107 = vadd.f32 %v93, %v105
    %v108 = vmul.f32 %v83, %v106
    %v109 = vmul.f32 %v84, %v107
    %v110 = vadd.f32 %v108, %v109
    %v111 = vadd.f32 %v85, %v110
    %112 = vst [vmem:[#allocation8] sm:$0xff] %v111
    // Predicated region
    $region30: #{tpu_custom_call.1} parent=1 // pred_check
      _
    $region31: #{tpu_custom_call.1} parent=1 // pred_check_branch
      %114 = sbr.rel (0) target = $region33
    $region32: #{tpu_custom_call.1} parent=1 // pred_region
      %s116 = ssub.s32 128, 128
      %117 = vsyncadd [#allocation4], %s116
      %s119 = sshll.u32 [#allocation8], 4
      %s120 = int_to_ptr.vmem [resolvable:$true] %s119
      %122 = dma.vmem_to_hbm [thread:$0]  %s120, 128, %s3, [#allocation4]
    $region33: #{tpu_custom_call.1} parent=1 // pred_fallthru
      _
    // Predicated region
    $region34: #{tpu_custom_call.1} parent=1 // pred_check
      _
    $region35: #{tpu_custom_call.1} parent=1 // pred_check_branch
      %124 = sbr.rel (0) target = $region37
    $region36: #{tpu_custom_call.1} parent=1 // pred_region
      %125 = dma.done [#allocation4], 128
    $region37: #{tpu_custom_call.1} parent=1 // pred_fallthru
      _
    %126 = vsyncpa [#allocation3], 1
    %127 = vsyncpa [#allocation6], 1
    %128 = vsyncpa [#allocation4], 1

</llo_original>
